<compile_context>
chip_gen: v6e
topology: v6e:2x2x1
jax: 0.10.0
libtpu: 0.0.40
codegen_flags: <defaults>
</compile_context>

<pallas_src>
import functools

import jax
import jax.numpy as jnp
from jax.experimental import pallas as pl
from jax.experimental.pallas import tpu as pltpu  # noqa: F401  (kept for TPU-specific extensions)

PAD = 128  # lane-dense padded feature width (one full vreg lane span)


def _fcextnet_kernel(sm_ref, cond_ref, w_ref, b_ref, o_ref, *, n_sm, n_cond):
    """Fused FCExtNet forward. Weights are BN-folded, transposed to [in, out],
    zero-padded to (PAD, PAD) and stacked along the layer axis."""
    # TODO(synk): training-mode dropout (random mask) not modeled; eval mode => identity.
    num_layers = w_ref.shape[0]
    b = b_ref[...]                                   # (L, PAD), padded entries are 0

    # ---- layer 0: torch.cat(sm, cond) fused as two partial matmuls on W0 row-slices ----
    w0 = w_ref[0]                                    # (PAD, PAD); rows >= n_sm+n_cond are zero
    h = jnp.dot(sm_ref[...], w0[:n_sm, :], preferred_element_type=jnp.float32)
    h = h + jnp.dot(cond_ref[...], w0[n_sm:n_sm + n_cond, :],
                    preferred_element_type=jnp.float32)
    h = jnp.maximum(h + b[0:1, :], 0.0)              # folded BN + bias, ReLU (padded cols stay 0)

    # ---- remaining hidden layers: Linear(+folded BN) -> ReLU ----
    for l in range(1, num_layers - 1):
        h = jnp.dot(h, w_ref[l], preferred_element_type=jnp.float32)
        h = jnp.maximum(h + b[l:l + 1, :], 0.0)

    # ---- final layer: Linear -> Softmax(dim=0) over the batch axis ----
    y = jnp.dot(h, w_ref[num_layers - 1], preferred_element_type=jnp.float32)
    y = y + b[num_layers - 1:num_layers, :]
    m = jnp.max(y, axis=0, keepdims=True)            # per-column max over batch (XLU)
    e = jnp.exp(y - m)                               # EUP
    denom = jnp.sum(e, axis=0, keepdims=True)
    o_ref[...] = (e * pl.reciprocal(denom, approx=True)).astype(o_ref.dtype)


def prepare_params(layer_params, eps=1e-5):
    """One-time offline prep: fold eval-mode BN into each Linear, transpose to
    [n_in, n_out], zero-pad to (PAD, PAD), and stack across layers."""
    w_list, b_list = [], []
    for p in layer_params:
        W = p["weight"]                              # [n_out, n_in] (PyTorch layout)
        bvec = p["bias"]
        if p["bn"] is not None:
            gamma, beta, mean, var = p["bn"]
            scale = gamma / jnp.sqrt(var + eps)
            W = W * scale[:, None]
            bvec = (bvec - mean) * scale + beta
        Wt = W.T                                     # [n_in, n_out]
        n_i, n_o = Wt.shape
        w_list.append(jnp.zeros((PAD, PAD), jnp.float32).at[:n_i, :n_o].set(Wt))
        b_list.append(jnp.zeros((PAD,), jnp.float32).at[:n_o].set(bvec))
    return jnp.stack(w_list), jnp.stack(b_list)


def fcextnet_forward(sm, cond, w_stack, b_stack):
    """sm: [B, n_sm], cond: [B, n_cond]; returns lane-dense [B, PAD] (column 0 is
    the logical [B, 1] FCExtNet output; padded columns hold softmax of zeros)."""
    B, n_sm = sm.shape
    n_cond = cond.shape[1]
    L = w_stack.shape[0]

    kernel = functools.partial(_fcextnet_kernel, n_sm=n_sm, n_cond=n_cond)
    full = lambda shp: pl.BlockSpec(shp, lambda: (0,) * len(shp))

    return pl.pallas_call(
        kernel,
        out_shape=jax.ShapeDtypeStruct((B, PAD), jnp.float32),
        in_specs=[
            full((B, n_sm)),
            full((B, n_cond)),
            full((L, PAD, PAD)),
            full((L, PAD)),
        ],
        out_specs=full((B, PAD)),
    )(sm, cond, w_stack, b_stack)


if __name__ == "__main__":
    # FCExtNet(num_layers=3, width_start=32, strategy='str', batch_norm=True,
    #          softmax=True, activation=ReLU, dropout_amt=0.1), eval mode.
    B = 8
    n_sm, n_cond = 24, 8                  # cat(sm, cond) -> width_start = 32
    width = n_sm + n_cond
    num_layers = 3
    eps = 1e-5

    key = jax.random.PRNGKey(0)
    keys = jax.random.split(key, 16)

    sm = jax.random.normal(keys[0], (B, n_sm), dtype=jnp.float32)
    cond = jax.random.normal(keys[1], (B, n_cond), dtype=jnp.float32)

    def linear_init(kw, kb, n_in_l, n_out_l):
        bound = 1.0 / jnp.sqrt(jnp.float32(n_in_l))
        W = jax.random.uniform(kw, (n_out_l, n_in_l), minval=-bound, maxval=bound,
                               dtype=jnp.float32)
        bvec = jax.random.uniform(kb, (n_out_l,), minval=-bound, maxval=bound,
                                  dtype=jnp.float32)
        return W, bvec

    layer_params = []
    k = 2
    # hidden layers (strategy='str' keeps the width): Linear -> Dropout -> BN -> ReLU
    for _ in range(num_layers - 1):
        W, bvec = linear_init(keys[k], keys[k + 1], width, width)
        gamma = jax.random.uniform(keys[k + 2], (width,), minval=0.5, maxval=1.5,
                                   dtype=jnp.float32)
        beta = 0.1 * jax.random.normal(keys[k + 3], (width,), dtype=jnp.float32)
        mean = 0.1 * jax.random.normal(keys[k + 4], (width,), dtype=jnp.float32)
        var = jax.random.uniform(keys[k + 5], (width,), minval=0.5, maxval=1.5,
                                 dtype=jnp.float32)
        layer_params.append({"weight": W, "bias": bvec, "bn": (gamma, beta, mean, var)})
        k += 6
    # final layer: Linear(width, 1) -> Dropout -> Softmax(dim=0), no BN / activation
    Wf, bf = linear_init(keys[k], keys[k + 1], width, 1)
    layer_params.append({"weight": Wf, "bias": bf, "bn": None})

    # One-time offline parameter prep (BN fold + transpose + pad + stack).
    w_stack, b_stack = prepare_params(layer_params, eps=eps)

    out_pad = jax.block_until_ready(fcextnet_forward(sm, cond, w_stack, b_stack))
    out = out_pad[:, :1]                                 # logical [B, 1] FCExtNet output

    # ---- pure-JAX reference (PyTorch eval-mode semantics, unfused params) ----
    x = jnp.concatenate([sm, cond], axis=1)
    h = x
    for p in layer_params[:-1]:
        h = h @ p["weight"].T + p["bias"]
        gamma, beta, mean, var = p["bn"]
        h = (h - mean) / jnp.sqrt(var + eps) * gamma + beta
        h = jnp.maximum(h, 0.0)
    y = h @ layer_params[-1]["weight"].T + layer_params[-1]["bias"]
    ref = jax.nn.softmax(y, axis=0)                       # nn.Softmax(dim=0)

    assert out.shape == ref.shape == (B, 1)
    assert jnp.allclose(out, ref, atol=2e-3, rtol=2e-3), (out, ref)

    print("KERNEL_OK")
</pallas_src>

<mosaic_0001>
module attributes {stable_mosaic.version = 11 : i64} {
  func.func @_fcextnet_kernel(%arg0: memref<8x24xf32, #tpu.memory_space<vmem>>, %arg1: memref<8x8xf32, #tpu.memory_space<vmem>>, %arg2: memref<3x128x128xf32, #tpu.memory_space<vmem>>, %arg3: memref<3x128xf32, #tpu.memory_space<vmem>>, %arg4: memref<8x128xf32, #tpu.memory_space<vmem>>) attributes {dimension_semantics = [], scalar_prefetch = 0 : i64, scratch_operands = 0 : i64, tpu.core_type = #tpu.core_type<tc>} {
    %c0 = arith.constant 0 : index
    %c0_0 = arith.constant 0 : index
    %0 = vector.load %arg3[%c0, %c0_0] : memref<3x128xf32, #tpu.memory_space<vmem>>, vector<3x128xf32>
    %c0_1 = arith.constant 0 : index
    %c0_2 = arith.constant 0 : index
    %c0_3 = arith.constant 0 : index
    %1 = vector.load %arg2[%c0_1, %c0_2, %c0_3] : memref<3x128x128xf32, #tpu.memory_space<vmem>>, vector<1x128x128xf32>
    %2 = vector.shape_cast %1 : vector<1x128x128xf32> to vector<128x128xf32>
    %c0_4 = arith.constant 0 : index
    %c0_5 = arith.constant 0 : index
    %3 = vector.load %arg0[%c0_4, %c0_5] : memref<8x24xf32, #tpu.memory_space<vmem>>, vector<8x24xf32>
    %4 = vector.extract_strided_slice %2 {offsets = [0, 0], sizes = [24, 128], strides = [1, 1]} : vector<128x128xf32> to vector<24x128xf32>
    %cst = arith.constant dense<0.000000e+00> : vector<8x128xf32>
    %5 = tpu.matmul %3, %4, %cst {dimension_numbers = #tpu.dot_dimension_numbers<[1], [0], [0], [1], [0, 0, 1, 1], [], []>} : vector<8x24xf32>, vector<24x128xf32>, vector<8x128xf32> -> vector<8x128xf32>
    %c0_6 = arith.constant 0 : index
    %c0_7 = arith.constant 0 : index
    %6 = vector.load %arg1[%c0_6, %c0_7] : memref<8x8xf32, #tpu.memory_space<vmem>>, vector<8x8xf32>
    %7 = vector.extract_strided_slice %2 {offsets = [24, 0], sizes = [8, 128], strides = [1, 1]} : vector<128x128xf32> to vector<8x128xf32>
    %cst_8 = arith.constant dense<0.000000e+00> : vector<8x128xf32>
    %8 = tpu.matmul %6, %7, %cst_8 {dimension_numbers = #tpu.dot_dimension_numbers<[1], [0], [0], [1], [0, 0, 1, 1], [], []>} : vector<8x8xf32>, vector<8x128xf32>, vector<8x128xf32> -> vector<8x128xf32>
    %9 = arith.addf %5, %8 : vector<8x128xf32>
    %10 = vector.extract_strided_slice %0 {offsets = [0, 0], sizes = [1, 128], strides = [1, 1]} : vector<3x128xf32> to vector<1x128xf32>
    %11 = vector.broadcast %10 : vector<1x128xf32> to vector<8x128xf32>
    %12 = arith.addf %9, %11 : vector<8x128xf32>
    %cst_9 = arith.constant 0.000000e+00 : f32
    %13 = vector.broadcast %cst_9 : f32 to vector<8x128xf32>
    %14 = arith.maximumf %12, %13 : vector<8x128xf32>
    %c1 = arith.constant 1 : index
    %c0_10 = arith.constant 0 : index
    %c0_11 = arith.constant 0 : index
    %15 = vector.load %arg2[%c1, %c0_10, %c0_11] : memref<3x128x128xf32, #tpu.memory_space<vmem>>, vector<1x128x128xf32>
    %16 = vector.shape_cast %15 : vector<1x128x128xf32> to vector<128x128xf32>
    %cst_12 = arith.constant dense<0.000000e+00> : vector<8x128xf32>
    %17 = tpu.matmul %14, %16, %cst_12 {dimension_numbers = #tpu.dot_dimension_numbers<[1], [0], [0], [1], [0, 0, 1, 1], [], []>} : vector<8x128xf32>, vector<128x128xf32>, vector<8x128xf32> -> vector<8x128xf32>
    %18 = vector.extract_strided_slice %0 {offsets = [1, 0], sizes = [1, 128], strides = [1, 1]} : vector<3x128xf32> to vector<1x128xf32>
    %19 = vector.broadcast %18 : vector<1x128xf32> to vector<8x128xf32>
    %20 = arith.addf %17, %19 : vector<8x128xf32>
    %cst_13 = arith.constant 0.000000e+00 : f32
    %21 = vector.broadcast %cst_13 : f32 to vector<8x128xf32>
    %22 = arith.maximumf %20, %21 : vector<8x128xf32>
    %c2 = arith.constant 2 : index
    %c0_14 = arith.constant 0 : index
    %c0_15 = arith.constant 0 : index
    %23 = vector.load %arg2[%c2, %c0_14, %c0_15] : memref<3x128x128xf32, #tpu.memory_space<vmem>>, vector<1x128x128xf32>
    %24 = vector.shape_cast %23 : vector<1x128x128xf32> to vector<128x128xf32>
    %cst_16 = arith.constant dense<0.000000e+00> : vector<8x128xf32>
    %25 = tpu.matmul %22, %24, %cst_16 {dimension_numbers = #tpu.dot_dimension_numbers<[1], [0], [0], [1], [0, 0, 1, 1], [], []>} : vector<8x128xf32>, vector<128x128xf32>, vector<8x128xf32> -> vector<8x128xf32>
    %26 = vector.extract_strided_slice %0 {offsets = [2, 0], sizes = [1, 128], strides = [1, 1]} : vector<3x128xf32> to vector<1x128xf32>
    %27 = vector.broadcast %26 : vector<1x128xf32> to vector<8x128xf32>
    %28 = arith.addf %25, %27 : vector<8x128xf32>
    %cst_17 = arith.constant dense<0xFF800000> : vector<128xf32>
    %29 = vector.multi_reduction <maximumf>, %28, %cst_17 [0] : vector<8x128xf32> to vector<128xf32>
    %30 = vector.shape_cast %29 : vector<128xf32> to vector<1x128xf32>
    %31 = vector.broadcast %30 : vector<1x128xf32> to vector<8x128xf32>
    %32 = arith.subf %28, %31 : vector<8x128xf32>
    %33 = math.exp %32 : vector<8x128xf32>
    %cst_18 = arith.constant dense<0.000000e+00> : vector<128xf32>
    %34 = vector.multi_reduction <add>, %33, %cst_18 [0] : vector<8x128xf32> to vector<128xf32>
    %35 = vector.shape_cast %34 : vector<128xf32> to vector<1x128xf32>
    %36 = tpu.reciprocal %35 {approx = true} : vector<1x128xf32> -> vector<1x128xf32>
    %37 = vector.broadcast %36 : vector<1x128xf32> to vector<8x128xf32>
    %38 = arith.mulf %33, %37 : vector<8x128xf32>
    %c0_19 = arith.constant 0 : index
    %c0_20 = arith.constant 0 : index
    %39 = vector.load %arg4[%c0_19, %c0_20] : memref<8x128xf32, #tpu.memory_space<vmem>>, vector<8x128xf32>
    tpu.vector_store %arg4[%c0_19, %c0_20], %38 {strides = array<i32>} : memref<8x128xf32, #tpu.memory_space<vmem>>, vector<8x128xf32>,
    return
  }
}

</mosaic_0001>

<llo_original>
// kernel: tpu_custom_call.1
$region0: #{tpu_custom_call.1}
  #allocation0 [shape = 'u32[]', space=smem, size = 0x4, offset = 0x4, fixed_abs, tag = 'smem constant byte address 0x4 - core index']
  #allocation1 [shape = 'u32[144,128]{1,0:T(1,128)}', space=vmem, size = 0x12000, scoped, tag = 'internal scratch']
  %s0 = inlined_call_operand.hbm [shape: f32[8,24], index: 0, kind: input, shape index: {}]
  %s1 = inlined_call_operand.hbm [shape: f32[8,8], index: 1, kind: input, shape index: {}]
  %s2 = inlined_call_operand.hbm [shape: f32[3,128,128], index: 2, kind: input, shape index: {}]
  %s3 = inlined_call_operand.vmem [shape: f32[3,128], index: 3, kind: input, shape index: {}]
  %s4 = inlined_call_operand.hbm [shape: f32[8,128], index: 4, kind: output, shape index: {}]
  %s5 = sld [smem:[#allocation0]]
  $region38: #{tpu_custom_call.1} parent=0
    _
  %s7 = ssub.s32 1, %s5
  %s8 = scalar_select 0, %s7, %s5
  $region1: #{tpu_custom_call.1} parent=0
    #allocation2 [shape = 'u8[4096]{0}', space=vmem, size = 0x1000, scoped, tag = 'input window, operand 0, single buffered']
    #allocation3 [shape = 's32[1]{0}', space=sflag, size = 0x4, scoped, tag = 'scoped memory for tpu_custom_call.1']
    #allocation4 [shape = 's32[1]{0}', space=sflag, size = 0x4, scoped, tag = 'scoped memory for tpu_custom_call.1']
    #allocation5 [shape = 'u8[4096]{0}', space=vmem, size = 0x1000, scoped, tag = 'input window, operand 1, single buffered']
    #allocation6 [shape = 's32[1]{0}', space=sflag, size = 0x4, scoped, tag = 'scoped memory for tpu_custom_call.1']
    #allocation7 [shape = 'u8[196608]{0}', space=vmem, size = 0x30000, scoped, tag = 'input window, operand 2, single buffered']
    #allocation8 [shape = 'u8[4096]{0}', space=vmem, size = 0x1000, scoped, tag = 'output window, operand 0, single buffered']
    %9 = vsyncpa [#allocation3], 0
    %10 = vsyncpa [#allocation6], 0
    %11 = vsyncpa [#allocation4], 0
    // Predicated region
    $region2: #{tpu_custom_call.1} parent=1 // pred_check
      _
    $region3: #{tpu_custom_call.1} parent=1 // pred_check_branch
      %13 = sbr.rel (0) target = $region5
    $region4: #{tpu_custom_call.1} parent=1 // pred_region
      %s15 = ssub.s32 128, 128
      %16 = vsyncadd [#allocation3], %s15
      %s18 = sshll.u32 [#allocation2], 4
      %s19 = int_to_ptr.vmem [resolvable:$true] %s18
      %21 = dma.hbm_to_vmem [thread:$0]  %s0, 128, %s19, [#allocation3]
    $region5: #{tpu_custom_call.1} parent=1 // pred_fallthru
      _
    // Predicated region
    $region6: #{tpu_custom_call.1} parent=1 // pred_check
      _
    $region7: #{tpu_custom_call.1} parent=1 // pred_check_branch
      %23 = sbr.rel (0) target = $region9
    $region8: #{tpu_custom_call.1} parent=1 // pred_region
      %s25 = ssub.s32 128, 128
      %26 = vsyncadd [#allocation6], %s25
      %s28 = sshll.u32 [#allocation5], 4
      %s29 = int_to_ptr.vmem [resolvable:$true] %s28
      %31 = dma.hbm_to_vmem [thread:$0]  %s1, 128, %s29, [#allocation6]
    $region9: #{tpu_custom_call.1} parent=1 // pred_fallthru
      _
    // Predicated region
    $region10: #{tpu_custom_call.1} parent=1 // pred_check
      _
    $region11: #{tpu_custom_call.1} parent=1 // pred_check_branch
      %33 = sbr.rel (0) target = $region13
    $region12: #{tpu_custom_call.1} parent=1 // pred_region
      %s35 = ssub.s32 6144, 6144
      %36 = vsyncadd [#allocation6], %s35
      %s37 = sshll.u32 [#allocation7], 4
      %s38 = int_to_ptr.vmem [resolvable:$true] %s37
      %43 = dma.hbm_to_vmem [thread:$0]  %s2, 6144, %s38, [#allocation6], 128, 128, 8
    $region13: #{tpu_custom_call.1} parent=1 // pred_fallthru
      _
    // Predicated region
    $region14: #{tpu_custom_call.1} parent=1 // pred_check
      _
    $region15: #{tpu_custom_call.1} parent=1 // pred_check_branch
      %45 = sbr.rel (0) target = $region17
    $region16: #{tpu_custom_call.1} parent=1 // pred_region
      _
    $region17: #{tpu_custom_call.1} parent=1 // pred_fallthru
      _
    // Predicated region
    $region18: #{tpu_custom_call.1} parent=1 // pred_check
      _
    $region19: #{tpu_custom_call.1} parent=1 // pred_check_branch
      %47 = sbr.rel (0) target = $region21
    $region20: #{tpu_custom_call.1} parent=1 // pred_region
      %48 = dma.done [#allocation3], 128
    $region21: #{tpu_custom_call.1} parent=1 // pred_fallthru
      _
    // Predicated region
    $region22: #{tpu_custom_call.1} parent=1 // pred_check
      _
    $region23: #{tpu_custom_call.1} parent=1 // pred_check_branch
      %50 = sbr.rel (0) target = $region25
    $region24: #{tpu_custom_call.1} parent=1 // pred_region
      %51 = dma.done [#allocation6], 128
    $region25: #{tpu_custom_call.1} parent=1 // pred_fallthru
      _
    // Predicated region
    $region26: #{tpu_custom_call.1} parent=1 // pred_check
      _
    $region27: #{tpu_custom_call.1} parent=1 // pred_check_branch
      %53 = sbr.rel (0) target = $region29
    $region28: #{tpu_custom_call.1} parent=1 // pred_region
      %54 = dma.done [#allocation6], 6144
    $region29: #{tpu_custom_call.1} parent=1 // pred_fallthru
      _
    %v55 = vld [vmem:[%s3] sm:$0x7]
    %v56 = vld [vmem:[#allocation7] sm:$0xff]
    %v57 = vld [vmem:[#allocation7 + $0x8] sm:$0xff]
    %v58 = vld [vmem:[#allocation7 + $0x10] sm:$0xff]
    %v59 = vld [vmem:[#allocation7 + $0x18] sm:$0xff]
    %v60 = vld [vmem:[#allocation2] sm:$0xff]
    %v61 = vld [vmem:[#allocation5] sm:$0xff]
    %vm62 = vcmask 64512
    %v64 = vsel %vm62, %v61, 0
    %66 = vmatprep.subr.mxu0 0.0
    %67 = vmatpush1.msra.mxu0 0.0
    %68 = vmatprep.subr.mxu0 0.0
    %69 = vmatpush1.msra.mxu0 0.0
    %70 = vmatprep.subr.mxu0 0.0
    %71 = vmatpush1.msra.mxu0 0.0
    %72 = vmatprep.subr.mxu0 0.0
    %73 = vmatpush1.msra.mxu0 0.0
    %74 = vmatprep.subr.mxu0 0.0
    %75 = vmatpush1.msra.mxu0 0.0
    %76 = vmatprep.subr.mxu0 0.0
    %77 = vmatpush1.msra.mxu0 0.0
    %78 = vmatprep.subr.mxu0 0.0
    %79 = vmatpush1.msra.mxu0 0.0
    %80 = vmatprep.subr.mxu0 0.0
    %81 = vmatpush1.msra.mxu0 0.0
    %82 = vmatprep.subr.mxu0 0.0
    %83 = vmatpush1.msra.mxu0 0.0
    %84 = vmatprep.subr.mxu0 0.0
    %85 = vmatpush1.msra.mxu0 0.0
    %86 = vmatprep.subr.mxu0 0.0
    %87 = vmatpush1.msra.mxu0 0.0
    %88 = vmatprep.subr.mxu0 0.0
    %89 = vmatpush1.msra.mxu0 0.0
    %90 = vmatprep.subr.mxu0 0.0
    %91 = vmatpush1.msra.mxu0 0.0
    %92 = vmatprep.subr.mxu0 0.0
    %93 = vmatpush1.msra.mxu0 0.0
    %94 = vmatprep.subr.mxu0 0.0
    %95 = vmatpush1.msra.mxu0 0.0
    %96 = vmatprep.subr.mxu0 0.0
    %97 = vmatpush1.msra.mxu0 %v59
    %98 = vmatprep.subr.mxu0 0.0
    %99 = vmatpush2.msra.mxu0 0.0
    %100 = vmatprep.subr.mxu0 0.0
    %101 = vmatpush2.msra.mxu0 0.0
    %102 = vmatprep.subr.mxu0 0.0
    %103 = vmatpush2.msra.mxu0 0.0
    %104 = vmatprep.subr.mxu0 0.0
    %105 = vmatpush2.msra.mxu0 0.0
    %106 = vmatprep.subr.mxu0 0.0
    %107 = vmatpush2.msra.mxu0 0.0
    %108 = vmatprep.subr.mxu0 0.0
    %109 = vmatpush2.msra.mxu0 0.0
    %110 = vmatprep.subr.mxu0 0.0
    %111 = vmatpush2.msra.mxu0 0.0
    %112 = vmatprep.subr.mxu0 0.0
    %113 = vmatpush2.msra.mxu0 0.0
    %114 = vmatprep.subr.mxu0 0.0
    %115 = vmatpush2.msra.mxu0 0.0
    %116 = vmatprep.subr.mxu0 0.0
    %117 = vmatpush2.msra.mxu0 0.0
    %118 = vmatprep.subr.mxu0 0.0
    %119 = vmatpush2.msra.mxu0 0.0
    %120 = vmatprep.subr.mxu0 0.0
    %121 = vmatpush2.msra.mxu0 0.0
    %122 = vmatprep.subr.mxu0 0.0
    %123 = vmatpush2.msra.mxu0 0.0
    %124 = vmatprep.subr.mxu0 0.0
    %125 = vmatpush2.msra.mxu0 0.0
    %126 = vmatprep.subr.mxu0 0.0
    %127 = vmatpush2.msra.mxu0 0.0
    %128 = vmatprep.subr.mxu0 0.0
    %129 = vmatpush2.msra.mxu0 0.0
    %130 = vmatprep.mubr.f32.mxu0 0.0
    %131 = vmatmul.mubr.f32.gmra.mxu0 %v64
    %v132 = vpop.f32.mrf.mxu0
    %v133 = vadd.f32 0.0, %v132
    %v134 = vpop.f32.mrf.mxu0
    %135 = vdwg.mxu0
    %vm136 = vcmask 195584
    %v138 = vsel %vm136, %v60, 0
    %140 = vmatprep.subr.mxu0 0.0
    %141 = vmatpush1.msra.mxu0 0.0
    %142 = vmatprep.subr.mxu0 0.0
    %143 = vmatpush1.msra.mxu0 0.0
    %144 = vmatprep.subr.mxu0 0.0
    %145 = vmatpush1.msra.mxu0 0.0
    %146 = vmatprep.subr.mxu0 0.0
    %147 = vmatpush1.msra.mxu0 0.0
    %148 = vmatprep.subr.mxu0 0.0
    %149 = vmatpush1.msra.mxu0 0.0
    %150 = vmatprep.subr.mxu0 0.0
    %151 = vmatpush1.msra.mxu0 0.0
    %152 = vmatprep.subr.mxu0 0.0
    %153 = vmatpush1.msra.mxu0 0.0
    %154 = vmatprep.subr.mxu0 0.0
    %155 = vmatpush1.msra.mxu0 0.0
    %156 = vmatprep.subr.mxu0 0.0
    %157 = vmatpush1.msra.mxu0 0.0
    %158 = vmatprep.subr.mxu0 0.0
    %159 = vmatpush1.msra.mxu0 0.0
    %160 = vmatprep.subr.mxu0 0.0
    %161 = vmatpush1.msra.mxu0 0.0
    %162 = vmatprep.subr.mxu0 0.0
    %163 = vmatpush1.msra.mxu0 0.0
    %164 = vmatprep.subr.mxu0 0.0
    %165 = vmatpush1.msra.mxu0 0.0
    %166 = vmatprep.subr.mxu0 0.0
    %167 = vmatpush1.msra.mxu0 %v58
    %168 = vmatprep.subr.mxu0 0.0
    %169 = vmatpush1.msra.mxu0 %v57
    %170 = vmatprep.subr.mxu0 0.0
    %171 = vmatpush1.msra.mxu0 %v56
    %172 = vmatprep.subr.mxu0 0.0
    %173 = vmatpush2.msra.mxu0 0.0
    %174 = vmatprep.subr.mxu0 0.0
    %175 = vmatpush2.msra.mxu0 0.0
    %176 = vmatprep.subr.mxu0 0.0
    %177 = vmatpush2.msra.mxu0 0.0
    %178 = vmatprep.subr.mxu0 0.0
    %179 = vmatpush2.msra.mxu0 0.0
    %180 = vmatprep.subr.mxu0 0.0
    %181 = vmatpush2.msra.mxu0 0.0
    %182 = vmatprep.subr.mxu0 0.0
    %183 = vmatpush2.msra.mxu0 0.0
    %184 = vmatprep.subr.mxu0 0.0
    %185 = vmatpush2.msra.mxu0 0.0
    %186 = vmatprep.subr.mxu0 0.0
    %187 = vmatpush2.msra.mxu0 0.0
    %188 = vmatprep.subr.mxu0 0.0
    %189 = vmatpush2.msra.mxu0 0.0
    %190 = vmatprep.subr.mxu0 0.0
    %191 = vmatpush2.msra.mxu0 0.0
    %192 = vmatprep.subr.mxu0 0.0
    %193 = vmatpush2.msra.mxu0 0.0
    %194 = vmatprep.subr.mxu0 0.0
    %195 = vmatpush2.msra.mxu0 0.0
    %196 = vmatprep.subr.mxu0 0.0
    %197 = vmatpush2.msra.mxu0 0.0
    %198 = vmatprep.subr.mxu0 0.0
    %199 = vmatpush2.msra.mxu0 0.0
    %200 = vmatprep.subr.mxu0 0.0
    %201 = vmatpush2.msra.mxu0 0.0
    %202 = vmatprep.subr.mxu0 0.0
    %203 = vmatpush2.msra.mxu0 0.0
    %204 = vmatprep.mubr.f32.mxu0 0.0
    %205 = vmatmul.mubr.f32.gmra.mxu0 %v138
    %v206 = vpop.f32.mrf.mxu0
    %v207 = vadd.f32 %v133, %v206
    %v208 = vpop.f32.mrf.mxu0
    %209 = vdwg.mxu0
    %v210 = vlaneseq
    %v211 = vshrl.u32 %v210, 7
    %v212 = vsub.s32 0, %v211
    %v213 = vrot.slane %v55, %v212
    %v214 = vadd.f32 %v207, %v213
    %v215 = vmax.f32 %v214, 0.0
    %s216 = scalar_lea.vmem [#allocation7], 128
    %v217 = vld [vmem:[%s216] sm:$0xff]
    %v218 = vld [vmem:[%s216 + $0x8] sm:$0xff]
    %v219 = vld [vmem:[%s216 + $0x10] sm:$0xff]
    %v220 = vld [vmem:[%s216 + $0x18] sm:$0xff]
    %v221 = vld [vmem:[%s216 + $0x20] sm:$0xff]
    %v222 = vld [vmem:[%s216 + $0x28] sm:$0xff]
    %v223 = vld [vmem:[%s216 + $0x30] sm:$0xff]
    %v224 = vld [vmem:[%s216 + $0x38] sm:$0xff]
    %v225 = vld [vmem:[%s216 + $0x40] sm:$0xff]
    %v226 = vld [vmem:[%s216 + $0x48] sm:$0xff]
    %v227 = vld [vmem:[%s216 + $0x50] sm:$0xff]
    %v228 = vld [vmem:[%s216 + $0x58] sm:$0xff]
    %v229 = vld [vmem:[%s216 + $0x60] sm:$0xff]
    %v230 = vld [vmem:[%s216 + $0x68] sm:$0xff]
    %v231 = vld [vmem:[%s216 + $0x70] sm:$0xff]
    %v232 = vld [vmem:[%s216 + $0x78] sm:$0xff]
    %v233 = vlaneseq
    %v234 = vshrl.u32 %v233, 7
    %v235 = vsub.s32 1, %v234
    %v236 = vrot.slane %v55, %v235
    %237 = vmatprep.subr.mxu0 0.0
    %238 = vmatpush1.msra.mxu0 %v232
    %239 = vmatprep.subr.mxu0 0.0
    %240 = vmatpush1.msra.mxu0 %v231
    %241 = vmatprep.subr.mxu0 0.0
    %242 = vmatpush1.msra.mxu0 %v230
    %243 = vmatprep.subr.mxu0 0.0
    %244 = vmatpush1.msra.mxu0 %v229
    %245 = vmatprep.subr.mxu0 0.0
    %246 = vmatpush1.msra.mxu0 %v228
    %247 = vmatprep.subr.mxu0 0.0
    %248 = vmatpush1.msra.mxu0 %v227
    %249 = vmatprep.subr.mxu0 0.0
    %250 = vmatpush1.msra.mxu0 %v226
    %251 = vmatprep.subr.mxu0 0.0
    %252 = vmatpush1.msra.mxu0 %v225
    %253 = vmatprep.subr.mxu0 0.0
    %254 = vmatpush1.msra.mxu0 %v224
    %255 = vmatprep.subr.mxu0 0.0
    %256 = vmatpush1.msra.mxu0 %v223
    %257 = vmatprep.subr.mxu0 0.0
    %258 = vmatpush1.msra.mxu0 %v222
    %259 = vmatprep.subr.mxu0 0.0
    %260 = vmatpush1.msra.mxu0 %v221
    %261 = vmatprep.subr.mxu0 0.0
    %262 = vmatpush1.msra.mxu0 %v220
    %263 = vmatprep.subr.mxu0 0.0
    %264 = vmatpush1.msra.mxu0 %v219
    %265 = vmatprep.subr.mxu0 0.0
    %266 = vmatpush1.msra.mxu0 %v218
    %267 = vmatprep.subr.mxu0 0.0
    %268 = vmatpush1.msra.mxu0 %v217
    %269 = vmatprep.subr.mxu0 0.0
    %270 = vmatpush2.msra.mxu0 0.0
    %271 = vmatprep.subr.mxu0 0.0
    %272 = vmatpush2.msra.mxu0 0.0
    %273 = vmatprep.subr.mxu0 0.0
    %274 = vmatpush2.msra.mxu0 0.0
    %275 = vmatprep.subr.mxu0 0.0
    %276 = vmatpush2.msra.mxu0 0.0
    %277 = vmatprep.subr.mxu0 0.0
    %278 = vmatpush2.msra.mxu0 0.0
    %279 = vmatprep.subr.mxu0 0.0
    %280 = vmatpush2.msra.mxu0 0.0
    %281 = vmatprep.subr.mxu0 0.0
    %282 = vmatpush2.msra.mxu0 0.0
    %283 = vmatprep.subr.mxu0 0.0
    %284 = vmatpush2.msra.mxu0 0.0
    %285 = vmatprep.subr.mxu0 0.0
    %286 = vmatpush2.msra.mxu0 0.0
    %287 = vmatprep.subr.mxu0 0.0
    %288 = vmatpush2.msra.mxu0 0.0
    %289 = vmatprep.subr.mxu0 0.0
    %290 = vmatpush2.msra.mxu0 0.0
    %291 = vmatprep.subr.mxu0 0.0
    %292 = vmatpush2.msra.mxu0 0.0
    %293 = vmatprep.subr.mxu0 0.0
    %294 = vmatpush2.msra.mxu0 0.0
    %295 = vmatprep.subr.mxu0 0.0
    %296 = vmatpush2.msra.mxu0 0.0
    %297 = vmatprep.subr.mxu0 0.0
    %298 = vmatpush2.msra.mxu0 0.0
    %299 = vmatprep.subr.mxu0 0.0
    %300 = vmatpush2.msra.mxu0 0.0
    %301 = vmatprep.mubr.f32.mxu0 0.0
    %302 = vmatmul.mubr.f32.gmra.mxu0 %v215
    %v303 = vpop.f32.mrf.mxu0
    %v304 = vadd.f32 %v236, %v303
    %v305 = vpop.f32.mrf.mxu0
    %306 = vdwg.mxu0
    %v307 = vmax.f32 %v304, 0.0
    %s308 = scalar_lea.vmem [#allocation7], 256
    %v309 = vld [vmem:[%s308] sm:$0xff]
    %v310 = vld [vmem:[%s308 + $0x8] sm:$0xff]
    %v311 = vld [vmem:[%s308 + $0x10] sm:$0xff]
    %v312 = vld [vmem:[%s308 + $0x18] sm:$0xff]
    %v313 = vld [vmem:[%s308 + $0x20] sm:$0xff]
    %v314 = vld [vmem:[%s308 + $0x28] sm:$0xff]
    %v315 = vld [vmem:[%s308 + $0x30] sm:$0xff]
    %v316 = vld [vmem:[%s308 + $0x38] sm:$0xff]
    %v317 = vld [vmem:[%s308 + $0x40] sm:$0xff]
    %v318 = vld [vmem:[%s308 + $0x48] sm:$0xff]
    %v319 = vld [vmem:[%s308 + $0x50] sm:$0xff]
    %v320 = vld [vmem:[%s308 + $0x58] sm:$0xff]
    %v321 = vld [vmem:[%s308 + $0x60] sm:$0xff]
    %v322 = vld [vmem:[%s308 + $0x68] sm:$0xff]
    %v323 = vld [vmem:[%s308 + $0x70] sm:$0xff]
    %v324 = vld [vmem:[%s308 + $0x78] sm:$0xff]
    %v325 = vlaneseq
    %v326 = vshrl.u32 %v325, 7
    %v327 = vsub.s32 2, %v326
    %v328 = vrot.slane %v55, %v327
    %329 = vmatprep.subr.mxu0 0.0
    %330 = vmatpush1.msra.mxu0 %v324
    %331 = vmatprep.subr.mxu0 0.0
    %332 = vmatpush1.msra.mxu0 %v323
    %333 = vmatprep.subr.mxu0 0.0
    %334 = vmatpush1.msra.mxu0 %v322
    %335 = vmatprep.subr.mxu0 0.0
    %336 = vmatpush1.msra.mxu0 %v321
    %337 = vmatprep.subr.mxu0 0.0
    %338 = vmatpush1.msra.mxu0 %v320
    %339 = vmatprep.subr.mxu0 0.0
    %340 = vmatpush1.msra.mxu0 %v319
    %341 = vmatprep.subr.mxu0 0.0
    %342 = vmatpush1.msra.mxu0 %v318
    %343 = vmatprep.subr.mxu0 0.0
    %344 = vmatpush1.msra.mxu0 %v317
    %345 = vmatprep.subr.mxu0 0.0
    %346 = vmatpush1.msra.mxu0 %v316
    %347 = vmatprep.subr.mxu0 0.0
    %348 = vmatpush1.msra.mxu0 %v315
    %349 = vmatprep.subr.mxu0 0.0
    %350 = vmatpush1.msra.mxu0 %v314
    %351 = vmatprep.subr.mxu0 0.0
    %352 = vmatpush1.msra.mxu0 %v313
    %353 = vmatprep.subr.mxu0 0.0
    %354 = vmatpush1.msra.mxu0 %v312
    %355 = vmatprep.subr.mxu0 0.0
    %356 = vmatpush1.msra.mxu0 %v311
    %357 = vmatprep.subr.mxu0 0.0
    %358 = vmatpush1.msra.mxu0 %v310
    %359 = vmatprep.subr.mxu0 0.0
    %360 = vmatpush1.msra.mxu0 %v309
    %361 = vmatprep.subr.mxu0 0.0
    %362 = vmatpush2.msra.mxu0 0.0
    %363 = vmatprep.subr.mxu0 0.0
    %364 = vmatpush2.msra.mxu0 0.0
    %365 = vmatprep.subr.mxu0 0.0
    %366 = vmatpush2.msra.mxu0 0.0
    %367 = vmatprep.subr.mxu0 0.0
    %368 = vmatpush2.msra.mxu0 0.0
    %369 = vmatprep.subr.mxu0 0.0
    %370 = vmatpush2.msra.mxu0 0.0
    %371 = vmatprep.subr.mxu0 0.0
    %372 = vmatpush2.msra.mxu0 0.0
    %373 = vmatprep.subr.mxu0 0.0
    %374 = vmatpush2.msra.mxu0 0.0
    %375 = vmatprep.subr.mxu0 0.0
    %376 = vmatpush2.msra.mxu0 0.0
    %377 = vmatprep.subr.mxu0 0.0
    %378 = vmatpush2.msra.mxu0 0.0
    %379 = vmatprep.subr.mxu0 0.0
    %380 = vmatpush2.msra.mxu0 0.0
    %381 = vmatprep.subr.mxu0 0.0
    %382 = vmatpush2.msra.mxu0 0.0
    %383 = vmatprep.subr.mxu0 0.0
    %384 = vmatpush2.msra.mxu0 0.0
    %385 = vmatprep.subr.mxu0 0.0
    %386 = vmatpush2.msra.mxu0 0.0
    %387 = vmatprep.subr.mxu0 0.0
    %388 = vmatpush2.msra.mxu0 0.0
    %389 = vmatprep.subr.mxu0 0.0
    %390 = vmatpush2.msra.mxu0 0.0
    %391 = vmatprep.subr.mxu0 0.0
    %392 = vmatpush2.msra.mxu0 0.0
    %393 = vmatprep.mubr.f32.mxu0 0.0
    %394 = vmatmul.mubr.f32.gmra.mxu0 %v307
    %v395 = vpop.f32.mrf.mxu0
    %v396 = vadd.f32 %v328, %v395
    %v397 = vpop.f32.mrf.mxu0
    %398 = vdwg.mxu0
    %v399 = vrot.slane %v396, 4
    %v400 = vmax.f32 %v396, %v399
    %v401 = vrot.slane %v400, 2
    %v402 = vmax.f32 %v400, %v401
    %v403 = vrot.slane %v402, 1
    %v404 = vmax.f32 %v402, %v403
    %v405 = vsub.f32 %v396, %v404
    %v406 = vmul.f32 %v405, 1.442695
    %v407 = vpow.pop %v406
    %v408 = vrot.slane %v407, 4
    %v409 = vadd.f32 %v407, %v408
    %v410 = vrot.slane %v409, 2
    %v411 = vadd.f32 %v409, %v410
    %v412 = vrot.slane %v411, 1
    %v413 = vadd.f32 %v411, %v412
    %v414 = vrcp.pop %v413
    %v415 = vmul.f32 %v407, %v414
    %416 = vst [vmem:[#allocation8] sm:$0xff] %v415
    // Predicated region
    $region30: #{tpu_custom_call.1} parent=1 // pred_check
      _
    $region31: #{tpu_custom_call.1} parent=1 // pred_check_branch
      %418 = sbr.rel (0) target = $region33
    $region32: #{tpu_custom_call.1} parent=1 // pred_region
      %s420 = ssub.s32 128, 128
      %421 = vsyncadd [#allocation4], %s420
      %s423 = sshll.u32 [#allocation8], 4
      %s424 = int_to_ptr.vmem [resolvable:$true] %s423
      %426 = dma.vmem_to_hbm [thread:$0]  %s424, 128, %s4, [#allocation4]
    $region33: #{tpu_custom_call.1} parent=1 // pred_fallthru
      _
    // Predicated region
    $region34: #{tpu_custom_call.1} parent=1 // pred_check
      _
    $region35: #{tpu_custom_call.1} parent=1 // pred_check_branch
      %428 = sbr.rel (0) target = $region37
    $region36: #{tpu_custom_call.1} parent=1 // pred_region
      %429 = dma.done [#allocation4], 128
    $region37: #{tpu_custom_call.1} parent=1 // pred_fallthru
      _
    %430 = vsyncpa [#allocation3], 1
    %431 = vsyncpa [#allocation6], 1
    %432 = vsyncpa [#allocation4], 1

</llo_original>
